<compile_context>
chip_gen: v5e
topology: v5e:2x2
jax: 0.10.0
libtpu: 0.0.40
codegen_flags: <defaults>
</compile_context>

<pallas_src>
import numpy as np

import jax
import jax.numpy as jnp
from jax.experimental import pallas as pl
from jax.experimental.pallas import tpu as pltpu


def _rup(x, m):
    return ((x + m - 1) // m) * m


# -----------------------------------------------------------------------------
# Host-side constant construction: one packed slab per layer.
# -----------------------------------------------------------------------------
def _layer_constants(w_t, b, k, H, W, N, cin, cpin):
    """Polyphase (sub-pixel) split of stride-2 ConvTranspose2d + SamePad crop,
    packed (weights / masks / scatter) into one padded 2-D f32 slab.

    w_t: (cin, cout, k, k) PyTorch ConvTranspose2d weight, b: (cout,).
    H, W: input spatial size (output is 2H x 2W).  N: batch folded into lanes.
    cin/cpin: real / padded input channel count (ones channel sits at row cin).
    """
    cout = int(w_t.shape[1])
    cpout = _rup(cout + 1, 8)          # +1 row for the self-propagating ones channel
    pt = (k - 2) // 2                  # SamePad top/left crop
    wt = np.asarray(w_t, np.float32)
    bb = np.asarray(b, np.float32)

    # Output pixel F[2u+ry, 2v+rx] = sum over taps (ky,kx) with
    #   ky == (ry+pt) mod 2, kx == (rx+pt) mod 2 of
    #   x[ci, u-dy, v-dx] * W[ci, co, ky, kx],  dy=(ky-ry-pt)/2, dx likewise.
    phase_order = ((0, 0), (0, 1), (1, 0), (1, 1))
    phases = []
    for (ry, rx) in phase_order:
        taps = []
        for ky in range(k):
            if (ky - ry - pt) % 2:
                continue
            for kx in range(k):
                if (kx - rx - pt) % 2:
                    continue
                taps.append(((ky - ry - pt) // 2, (kx - rx - pt) // 2, ky, kx))
        phases.append(taps)
    shifts = sorted({(dy, dx) for taps in phases for (dy, dx, _, _) in taps})
    d_of = {s: i for i, s in enumerate(shifts)}
    D = len(shifts)
    d00 = d_of[(0, 0)]                 # the (0,0) shift always exists

    HW = H * W
    NHW = N * HW

    # Phase-weight matrix, channel-blocks padded to 8 sublanes.  Bias and the
    # ones-channel propagation are folded into the (0,0)-shift ones column.
    w_big = np.zeros((4 * cpout, D * cpin), np.float32)
    for p, taps in enumerate(phases):
        for (dy, dx, ky, kx) in taps:
            d = d_of[(dy, dx)]
            # block[co, ci] = W[ci, co, ky, kx]
            w_big[p * cpout:p * cpout + cout,
                  d * cpin:d * cpin + cin] = wt[:, :, ky, kx].T
        w_big[p * cpout:p * cpout + cout, d00 * cpin + cin] = bb   # bias
        w_big[p * cpout + cout, d00 * cpin + cin] = 1.0            # keep ones alive

    # Per-shift OOB masks (destination positions whose tap is outside the
    # image), tiled over the N images folded into lanes.  Also zeroes any
    # cross-image / wrap-around data the circular roll pulls in.
    mask1 = np.zeros((D, HW), np.float32)
    for d, (dy, dx) in enumerate(shifts):
        for u in range(H):
            for v in range(W):
                if 0 <= u - dy < H and 0 <= v - dx < W:
                    mask1[d, u * W + v] = 1.0
    mask = np.tile(mask1, (1, N))                      # (D, N*HW)

    # 0/1 phase -> row-major (2H, 2W) scatter, block-diagonal over images.
    scat = np.zeros((4, NHW, 4 * NHW), np.float32)
    for p, (ry, rx) in enumerate(phase_order):
        for n in range(N):
            for u in range(H):
                for v in range(W):
                    scat[p, n * HW + u * W + v,
                         n * 4 * HW + (2 * u + ry) * (2 * W) + 2 * v + rx] = 1.0

    # Pack: [w_big ; masks ; scat(phase-stacked)] with 8/128-aligned offsets.
    r_mask = _rup(4 * cpout, 8)
    r_scat = r_mask + _rup(D, 8)
    rows = _rup(r_scat + 4 * NHW, 8)
    cols = _rup(max(D * cpin, NHW, 4 * NHW), 128)
    packed = np.zeros((rows, cols), np.float32)
    packed[0:4 * cpout, 0:D * cpin] = w_big
    packed[r_mask:r_mask + D, 0:NHW] = mask
    packed[r_scat:r_scat + 4 * NHW, 0:4 * NHW] = scat.reshape(4 * NHW, 4 * NHW)

    meta = dict(D=D, cin=cin, cpin=cpin, cout=cout, cpout=cpout, H=H, W=W,
                NHW=NHW, shifts=tuple(shifts), d00=d00,
                r_mask=r_mask, r_scat=r_scat)
    return packed, meta


# -----------------------------------------------------------------------------
# Fused decoder forward (single pallas_call, single grid step, 3 operands).
# -----------------------------------------------------------------------------
def decoder_forward(z_nchw, params):
    """params: list of (w_t (Cin,Cout,k,k), b (Cout,), k) per decoder layer."""
    N, C0, H0, W0 = map(int, z_nchw.shape)

    # Static per-layer constants (packed slabs).
    packed_list, metas = [], []
    cin, cpin, H, W = C0, _rup(C0 + 1, 8), H0, W0
    for (w_t, b, k) in params:
        assert int(w_t.shape[0]) == cin
        pk, meta = _layer_constants(np.asarray(w_t), np.asarray(b), int(k),
                                    H, W, N, cin, cpin)
        packed_list.append(jnp.asarray(pk))
        metas.append(meta)
        cin, cpin, H, W = meta['cout'], meta['cpout'], 2 * H, 2 * W
    Cf, Cpf, Hf, Wf = cin, cpin, H, W
    n_layers = len(metas)

    # Input: (N, C0, H0, W0) -> (Cpin0, N*H0*W0), channels on sublanes, batch
    # folded into lanes, ones channel at row C0, zero padding rows above.
    L0 = N * H0 * W0
    cp0 = metas[0]['cpin']
    x2d = jnp.transpose(z_nchw, (1, 0, 2, 3)).reshape(C0, L0).astype(jnp.float32)
    pads = [x2d, jnp.ones((1, L0), jnp.float32)]
    if cp0 - C0 - 1 > 0:
        pads.append(jnp.zeros((cp0 - C0 - 1, L0), jnp.float32))
    x2d = jnp.concatenate(pads, axis=0)

    def kernel(x_ref, *args):
        const_refs = args[:n_layers]
        o_ref = args[n_layers]

        cur = x_ref[...]                                     # (Cpin0, N*H0*W0)
        for li, meta in enumerate(metas):
            c_ref = const_refs[li]
            D, cpi, cpo = meta['D'], meta['cpin'], meta['cpout']
            nhw, w_in = meta['NHW'], meta['W']
            r_mask, r_scat = meta['r_mask'], meta['r_scat']

            w_mat = c_ref[0:4 * cpo, 0:D * cpi]              # (4*Cpout, D*Cpin)

            # im2col over the polyphase taps: D rotated + masked copies of the
            # flat activation stacked on the contraction (sublane) axis.
            pieces = []
            for d, (dy, dx) in enumerate(meta['shifts']):
                if d == meta['d00']:
                    pieces.append(cur)                       # no shift, mask == 1
                    continue
                s = (dy * w_in + dx) % nhw                   # flat lane rotation
                if nhw % 128 == 0:
                    rolled = pltpu.roll(cur, shift=s, axis=1)    # XLU rotate
                else:
                    rolled = jnp.roll(cur, s, axis=1)            # slice+concat
                m = c_ref[r_mask + d:r_mask + d + 1, 0:nhw]      # (1, nhw)
                pieces.append(rolled * m)                        # zero OOB taps
            patches = jnp.concatenate(pieces, axis=0)            # (D*Cpin, nhw)

            # One matmul for all 4 output phases; bias + ones-channel come in
            # through the (0,0)-shift ones column of w_mat.
            ph = jnp.dot(w_mat, patches,
                         preferred_element_type=jnp.float32)     # (4*Cpout, nhw)

            # Interleave phase sub-images into flat row-major (2H, 2W) via
            # constant 0/1 scatter matmuls (lane-dense result, no strided
            # stores).  Disjoint output columns -> exact sum.
            out = None
            for p in range(4):
                scat_p = c_ref[r_scat + p * nhw:r_scat + (p + 1) * nhw,
                               0:4 * nhw]                        # (nhw, 4*nhw)
                part = jnp.dot(ph[p * cpo:(p + 1) * cpo, :], scat_p,
                               preferred_element_type=jnp.float32)
                out = part if out is None else out + part        # (Cpout, 4*nhw)

            cur = jnp.maximum(out, 0.0)      # ReLU every layer; ones row stays 1

        o_ref[...] = cur.astype(o_ref.dtype)                     # (Cpf, N*Hf*Wf)

    operands = [x2d] + packed_list
    in_specs = [pl.BlockSpec(op.shape, lambda i: (0, 0)) for op in operands]

    out2d = pl.pallas_call(
        kernel,
        out_shape=jax.ShapeDtypeStruct((Cpf, N * Hf * Wf), jnp.float32),
        grid=(1,),
        in_specs=in_specs,
        out_specs=pl.BlockSpec((Cpf, N * Hf * Wf), lambda i: (0, 0)),
        compiler_params=pltpu.CompilerParams(
            dimension_semantics=("arbitrary",),
            vmem_limit_bytes=32 * 1024 * 1024),
    )(*operands)

    # Drop channel padding, un-fold the batch, back to NCHW (tiny XLA ops).
    out = out2d[:Cf].reshape(Cf, N, Hf, Wf)
    return jnp.transpose(out, (1, 0, 2, 3))


class DecoderPallas:
    """JAX/Pallas port of model/Decoder.py::Decoder."""

    def __init__(self, n_hidden, kernel_size, key):
        chans = list(reversed([1] + list(n_hidden)))       # e.g. [5, 3, 1]
        ksizes = list(reversed(list(kernel_size)))         # e.g. [3, 5]
        self.params = []
        for i, k in enumerate(ksizes):
            cin, cout = chans[i], chans[i + 1]
            key, kw, kb = jax.random.split(key, 3)
            w = 0.1 * jax.random.normal(kw, (cin, cout, k, k), jnp.float32)
            bb = 0.01 * jax.random.normal(kb, (cout,), jnp.float32)
            self.params.append((w, bb, k))

    def __call__(self, z_nchw):
        return decoder_forward(z_nchw, self.params)


# -----------------------------------------------------------------------------
# Pure-JAX (XLA conv) reference for the correctness check.
# -----------------------------------------------------------------------------
def _reference_layer(x_nchw, w_t, b, k):
    """ConvTranspose2d(stride=2) + ConvTranspose2dSamePad(k,2) + ReLU."""
    Cout = w_t.shape[1]
    w_conv = jnp.transpose(w_t[:, :, ::-1, ::-1], (1, 0, 2, 3))   # OIHW
    full = jax.lax.conv_general_dilated(
        x_nchw, w_conv, window_strides=(1, 1),
        padding=[(k - 1, k - 1), (k - 1, k - 1)],
        lhs_dilation=(2, 2),
        dimension_numbers=("NCHW", "OIHW", "NCHW"))
    full = full + b.reshape(1, Cout, 1, 1)
    pad_tot = k - 2
    pt, pb = pad_tot // 2, pad_tot - pad_tot // 2
    Hf, Wf = full.shape[2], full.shape[3]
    cropped = full[:, :, pt:Hf - pb, pt:Wf - pb]
    return jnp.maximum(cropped, 0.0)


if __name__ == "__main__":
    # Small config: n_hidden=[3, 5], kernel_size=[5, 3]
    #   -> decoder channels [5, 3, 1], layer kernels [3, 5]
    n_hidden = [3, 5]
    kernel_size = [5, 3]

    key = jax.random.PRNGKey(0)
    key, kz, kp = jax.random.split(key, 3)

    # latent z: NCHW = (2, 5, 4, 4) -> decoder output (2, 1, 16, 16)
    z = jax.random.normal(kz, (2, 5, 4, 4), jnp.float32)

    dec = DecoderPallas(n_hidden, kernel_size, kp)
    x_r = jax.block_until_ready(dec(z))

    # Independent reference check (pure JAX/XLA transposed conv).
    ref = z
    for w, bb, k in dec.params:
        ref = _reference_layer(ref, w, bb, k)

    assert x_r.shape == (2, 1, 16, 16), x_r.shape
    max_err = float(jnp.max(jnp.abs(x_r - ref)))
    assert jnp.allclose(x_r, ref, atol=1e-4, rtol=1e-4), max_err

    print("KERNEL_OK")
</pallas_src>

<mosaic_0001>
module attributes {stable_mosaic.version = 11 : i64} {
  func.func @kernel(%arg0: i32, %arg1: memref<8x32xf32, #tpu.memory_space<vmem>>, %arg2: memref<168x128xf32, #tpu.memory_space<vmem>>, %arg3: memref<560x512xf32, #tpu.memory_space<vmem>>, %arg4: memref<8x512xf32, #tpu.memory_space<vmem>>) attributes {dimension_semantics = [#tpu.dimension_semantics<arbitrary>], iteration_bounds = array<i64: 1>, scalar_prefetch = 0 : i64, scratch_operands = 0 : i64, tpu.core_type = #tpu.core_type<tc>, window_params = [{pipeline_mode = #tpu.pipeline_mode<synchronous>, transform_indices = @transform_0, window_bounds = array<i64: 8, 32>}, {pipeline_mode = #tpu.pipeline_mode<synchronous>, transform_indices = @transform_1, window_bounds = array<i64: 168, 128>}, {pipeline_mode = #tpu.pipeline_mode<synchronous>, transform_indices = @transform_2, window_bounds = array<i64: 560, 512>}, {pipeline_mode = #tpu.pipeline_mode<synchronous>, transform_indices = @transform_3, window_bounds = array<i64: 8, 512>}]} {
    %c0 = arith.constant 0 : index
    %c0_0 = arith.constant 0 : index
    %0 = vector.load %arg1[%c0, %c0_0] : memref<8x32xf32, #tpu.memory_space<vmem>>, vector<8x32xf32>
    %c0_1 = arith.constant 0 : index
    %c0_2 = arith.constant 0 : index
    %1 = vector.load %arg2[%c0_1, %c0_2] : memref<168x128xf32, #tpu.memory_space<vmem>>, vector<32x32xf32>
    %2 = vector.extract_strided_slice %0 {offsets = [0, 31], sizes = [8, 1], strides = [1, 1]} : vector<8x32xf32> to vector<8x1xf32>
    %3 = vector.extract_strided_slice %0 {offsets = [0, 0], sizes = [8, 31], strides = [1, 1]} : vector<8x32xf32> to vector<8x31xf32>
    %4 = tpu.concatenate %2, %3 in 1 : vector<8x1xf32>, vector<8x31xf32> -> vector<8x32xf32>
    %c33 = arith.constant 33 : index
    %c0_3 = arith.constant 0 : index
    %5 = vector.load %arg2[%c33, %c0_3] : memref<168x128xf32, #tpu.memory_space<vmem>>, vector<1x32xf32>
    %6 = vector.broadcast %5 : vector<1x32xf32> to vector<8x32xf32>
    %7 = arith.mulf %4, %6 : vector<8x32xf32>
    %8 = vector.extract_strided_slice %0 {offsets = [0, 28], sizes = [8, 4], strides = [1, 1]} : vector<8x32xf32> to vector<8x4xf32>
    %9 = vector.extract_strided_slice %0 {offsets = [0, 0], sizes = [8, 28], strides = [1, 1]} : vector<8x32xf32> to vector<8x28xf32>
    %10 = tpu.concatenate %8, %9 in 1 : vector<8x4xf32>, vector<8x28xf32> -> vector<8x32xf32>
    %c34 = arith.constant 34 : index
    %c0_4 = arith.constant 0 : index
    %11 = vector.load %arg2[%c34, %c0_4] : memref<168x128xf32, #tpu.memory_space<vmem>>, vector<1x32xf32>
    %12 = vector.broadcast %11 : vector<1x32xf32> to vector<8x32xf32>
    %13 = arith.mulf %10, %12 : vector<8x32xf32>
    %14 = vector.extract_strided_slice %0 {offsets = [0, 27], sizes = [8, 5], strides = [1, 1]} : vector<8x32xf32> to vector<8x5xf32>
    %15 = vector.extract_strided_slice %0 {offsets = [0, 0], sizes = [8, 27], strides = [1, 1]} : vector<8x32xf32> to vector<8x27xf32>
    %16 = tpu.concatenate %14, %15 in 1 : vector<8x5xf32>, vector<8x27xf32> -> vector<8x32xf32>
    %c35 = arith.constant 35 : index
    %c0_5 = arith.constant 0 : index
    %17 = vector.load %arg2[%c35, %c0_5] : memref<168x128xf32, #tpu.memory_space<vmem>>, vector<1x32xf32>
    %18 = vector.broadcast %17 : vector<1x32xf32> to vector<8x32xf32>
    %19 = arith.mulf %16, %18 : vector<8x32xf32>
    %20 = tpu.concatenate %0, %7, %13, %19 in 0 : vector<8x32xf32>, vector<8x32xf32>, vector<8x32xf32>, vector<8x32xf32> -> vector<32x32xf32>
    %cst = arith.constant dense<0.000000e+00> : vector<32x32xf32>
    %21 = tpu.matmul %1, %20, %cst {dimension_numbers = #tpu.dot_dimension_numbers<[1], [0], [0], [1], [0, 0, 1, 1], [], []>} : vector<32x32xf32>, vector<32x32xf32>, vector<32x32xf32> -> vector<32x32xf32>
    %c40 = arith.constant 40 : index
    %c0_6 = arith.constant 0 : index
    %22 = vector.load %arg2[%c40, %c0_6] : memref<168x128xf32, #tpu.memory_space<vmem>>, vector<32x128xf32>
    %23 = vector.extract_strided_slice %21 {offsets = [0, 0], sizes = [8, 32], strides = [1, 1]} : vector<32x32xf32> to vector<8x32xf32>
    %cst_7 = arith.constant dense<0.000000e+00> : vector<8x128xf32>
    %24 = tpu.matmul %23, %22, %cst_7 {dimension_numbers = #tpu.dot_dimension_numbers<[1], [0], [0], [1], [0, 0, 1, 1], [], []>} : vector<8x32xf32>, vector<32x128xf32>, vector<8x128xf32> -> vector<8x128xf32>
    %c72 = arith.constant 72 : index
    %c0_8 = arith.constant 0 : index
    %25 = vector.load %arg2[%c72, %c0_8] : memref<168x128xf32, #tpu.memory_space<vmem>>, vector<32x128xf32>
    %26 = vector.extract_strided_slice %21 {offsets = [8, 0], sizes = [8, 32], strides = [1, 1]} : vector<32x32xf32> to vector<8x32xf32>
    %cst_9 = arith.constant dense<0.000000e+00> : vector<8x128xf32>
    %27 = tpu.matmul %26, %25, %cst_9 {dimension_numbers = #tpu.dot_dimension_numbers<[1], [0], [0], [1], [0, 0, 1, 1], [], []>} : vector<8x32xf32>, vector<32x128xf32>, vector<8x128xf32> -> vector<8x128xf32>
    %28 = arith.addf %24, %27 : vector<8x128xf32>
    %c104 = arith.constant 104 : index
    %c0_10 = arith.constant 0 : index
    %29 = vector.load %arg2[%c104, %c0_10] : memref<168x128xf32, #tpu.memory_space<vmem>>, vector<32x128xf32>
    %30 = vector.extract_strided_slice %21 {offsets = [16, 0], sizes = [8, 32], strides = [1, 1]} : vector<32x32xf32> to vector<8x32xf32>
    %cst_11 = arith.constant dense<0.000000e+00> : vector<8x128xf32>
    %31 = tpu.matmul %30, %29, %cst_11 {dimension_numbers = #tpu.dot_dimension_numbers<[1], [0], [0], [1], [0, 0, 1, 1], [], []>} : vector<8x32xf32>, vector<32x128xf32>, vector<8x128xf32> -> vector<8x128xf32>
    %32 = arith.addf %28, %31 : vector<8x128xf32>
    %c136 = arith.constant 136 : index
    %c0_12 = arith.constant 0 : index
    %33 = vector.load %arg2[%c136, %c0_12] : memref<168x128xf32, #tpu.memory_space<vmem>>, vector<32x128xf32>
    %34 = vector.extract_strided_slice %21 {offsets = [24, 0], sizes = [8, 32], strides = [1, 1]} : vector<32x32xf32> to vector<8x32xf32>
    %cst_13 = arith.constant dense<0.000000e+00> : vector<8x128xf32>
    %35 = tpu.matmul %34, %33, %cst_13 {dimension_numbers = #tpu.dot_dimension_numbers<[1], [0], [0], [1], [0, 0, 1, 1], [], []>} : vector<8x32xf32>, vector<32x128xf32>, vector<8x128xf32> -> vector<8x128xf32>
    %36 = arith.addf %32, %35 : vector<8x128xf32>
    %cst_14 = arith.constant 0.000000e+00 : f32
    %37 = vector.broadcast %cst_14 : f32 to vector<8x128xf32>
    %38 = arith.maximumf %36, %37 : vector<8x128xf32>
    %c0_15 = arith.constant 0 : index
    %c0_16 = arith.constant 0 : index
    %39 = vector.load %arg3[%c0_15, %c0_16] : memref<560x512xf32, #tpu.memory_space<vmem>>, vector<32x72xf32>
    %c119_i32 = arith.constant 119 : i32
    %40 = tpu.dynamic_rotate %38 by %c119_i32 dim 1 : vector<8x128xf32>, i32 -> vector<8x128xf32>
    %c32 = arith.constant 32 : index
    %c0_17 = arith.constant 0 : index
    %41 = vector.load %arg3[%c32, %c0_17] : memref<560x512xf32, #tpu.memory_space<vmem>>, vector<1x128xf32>
    %42 = vector.broadcast %41 : vector<1x128xf32> to vector<8x128xf32>
    %43 = arith.mulf %40, %42 : vector<8x128xf32>
    %c120_i32 = arith.constant 120 : i32
    %44 = tpu.dynamic_rotate %38 by %c120_i32 dim 1 : vector<8x128xf32>, i32 -> vector<8x128xf32>
    %c33_18 = arith.constant 33 : index
    %c0_19 = arith.constant 0 : index
    %45 = vector.load %arg3[%c33_18, %c0_19] : memref<560x512xf32, #tpu.memory_space<vmem>>, vector<1x128xf32>
    %46 = vector.broadcast %45 : vector<1x128xf32> to vector<8x128xf32>
    %47 = arith.mulf %44, %46 : vector<8x128xf32>
    %c121_i32 = arith.constant 121 : i32
    %48 = tpu.dynamic_rotate %38 by %c121_i32 dim 1 : vector<8x128xf32>, i32 -> vector<8x128xf32>
    %c34_20 = arith.constant 34 : index
    %c0_21 = arith.constant 0 : index
    %49 = vector.load %arg3[%c34_20, %c0_21] : memref<560x512xf32, #tpu.memory_space<vmem>>, vector<1x128xf32>
    %50 = vector.broadcast %49 : vector<1x128xf32> to vector<8x128xf32>
    %51 = arith.mulf %48, %50 : vector<8x128xf32>
    %c127_i32 = arith.constant 127 : i32
    %52 = tpu.dynamic_rotate %38 by %c127_i32 dim 1 : vector<8x128xf32>, i32 -> vector<8x128xf32>
    %c35_22 = arith.constant 35 : index
    %c0_23 = arith.constant 0 : index
    %53 = vector.load %arg3[%c35_22, %c0_23] : memref<560x512xf32, #tpu.memory_space<vmem>>, vector<1x128xf32>
    %54 = vector.broadcast %53 : vector<1x128xf32> to vector<8x128xf32>
    %55 = arith.mulf %52, %54 : vector<8x128xf32>
    %c1_i32 = arith.constant 1 : i32
    %56 = tpu.dynamic_rotate %38 by %c1_i32 dim 1 : vector<8x128xf32>, i32 -> vector<8x128xf32>
    %c37 = arith.constant 37 : index
    %c0_24 = arith.constant 0 : index
    %57 = vector.load %arg3[%c37, %c0_24] : memref<560x512xf32, #tpu.memory_space<vmem>>, vector<1x128xf32>
    %58 = vector.broadcast %57 : vector<1x128xf32> to vector<8x128xf32>
    %59 = arith.mulf %56, %58 : vector<8x128xf32>
    %c7_i32 = arith.constant 7 : i32
    %60 = tpu.dynamic_rotate %38 by %c7_i32 dim 1 : vector<8x128xf32>, i32 -> vector<8x128xf32>
    %c38 = arith.constant 38 : index
    %c0_25 = arith.constant 0 : index
    %61 = vector.load %arg3[%c38, %c0_25] : memref<560x512xf32, #tpu.memory_space<vmem>>, vector<1x128xf32>
    %62 = vector.broadcast %61 : vector<1x128xf32> to vector<8x128xf32>
    %63 = arith.mulf %60, %62 : vector<8x128xf32>
    %c8_i32 = arith.constant 8 : i32
    %64 = tpu.dynamic_rotate %38 by %c8_i32 dim 1 : vector<8x128xf32>, i32 -> vector<8x128xf32>
    %c39 = arith.constant 39 : index
    %c0_26 = arith.constant 0 : index
    %65 = vector.load %arg3[%c39, %c0_26] : memref<560x512xf32, #tpu.memory_space<vmem>>, vector<1x128xf32>
    %66 = vector.broadcast %65 : vector<1x128xf32> to vector<8x128xf32>
    %67 = arith.mulf %64, %66 : vector<8x128xf32>
    %c9_i32 = arith.constant 9 : i32
    %68 = tpu.dynamic_rotate %38 by %c9_i32 dim 1 : vector<8x128xf32>, i32 -> vector<8x128xf32>
    %c40_27 = arith.constant 40 : index
    %c0_28 = arith.constant 0 : index
    %69 = vector.load %arg3[%c40_27, %c0_28] : memref<560x512xf32, #tpu.memory_space<vmem>>, vector<1x128xf32>
    %70 = vector.broadcast %69 : vector<1x128xf32> to vector<8x128xf32>
    %71 = arith.mulf %68, %70 : vector<8x128xf32>
    %72 = tpu.concatenate %43, %47, %51, %55, %38, %59, %63, %67, %71 in 0 : vector<8x128xf32>, vector<8x128xf32>, vector<8x128xf32>, vector<8x128xf32>, vector<8x128xf32>, vector<8x128xf32>, vector<8x128xf32>, vector<8x128xf32>, vector<8x128xf32> -> vector<72x128xf32>
    %cst_29 = arith.constant dense<0.000000e+00> : vector<32x128xf32>
    %73 = tpu.matmul %39, %72, %cst_29 {dimension_numbers = #tpu.dot_dimension_numbers<[1], [0], [0], [1], [0, 0, 1, 1], [], []>} : vector<32x72xf32>, vector<72x128xf32>, vector<32x128xf32> -> vector<32x128xf32>
    %c48 = arith.constant 48 : index
    %c0_30 = arith.constant 0 : index
    %74 = vector.load %arg3[%c48, %c0_30] : memref<560x512xf32, #tpu.memory_space<vmem>>, vector<128x512xf32>
    %75 = vector.extract_strided_slice %73 {offsets = [0, 0], sizes = [8, 128], strides = [1, 1]} : vector<32x128xf32> to vector<8x128xf32>
    %cst_31 = arith.constant dense<0.000000e+00> : vector<8x512xf32>
    %76 = tpu.matmul %75, %74, %cst_31 {dimension_numbers = #tpu.dot_dimension_numbers<[1], [0], [0], [1], [0, 0, 1, 1], [], []>} : vector<8x128xf32>, vector<128x512xf32>, vector<8x512xf32> -> vector<8x512xf32>
    %c176 = arith.constant 176 : index
    %c0_32 = arith.constant 0 : index
    %77 = vector.load %arg3[%c176, %c0_32] : memref<560x512xf32, #tpu.memory_space<vmem>>, vector<128x512xf32>
    %78 = vector.extract_strided_slice %73 {offsets = [8, 0], sizes = [8, 128], strides = [1, 1]} : vector<32x128xf32> to vector<8x128xf32>
    %cst_33 = arith.constant dense<0.000000e+00> : vector<8x512xf32>
    %79 = tpu.matmul %78, %77, %cst_33 {dimension_numbers = #tpu.dot_dimension_numbers<[1], [0], [0], [1], [0, 0, 1, 1], [], []>} : vector<8x128xf32>, vector<128x512xf32>, vector<8x512xf32> -> vector<8x512xf32>
    %80 = arith.addf %76, %79 : vector<8x512xf32>
    %c304 = arith.constant 304 : index
    %c0_34 = arith.constant 0 : index
    %81 = vector.load %arg3[%c304, %c0_34] : memref<560x512xf32, #tpu.memory_space<vmem>>, vector<128x512xf32>
    %82 = vector.extract_strided_slice %73 {offsets = [16, 0], sizes = [8, 128], strides = [1, 1]} : vector<32x128xf32> to vector<8x128xf32>
    %cst_35 = arith.constant dense<0.000000e+00> : vector<8x512xf32>
    %83 = tpu.matmul %82, %81, %cst_35 {dimension_numbers = #tpu.dot_dimension_numbers<[1], [0], [0], [1], [0, 0, 1, 1], [], []>} : vector<8x128xf32>, vector<128x512xf32>, vector<8x512xf32> -> vector<8x512xf32>
    %84 = arith.addf %80, %83 : vector<8x512xf32>
    %c432 = arith.constant 432 : index
    %c0_36 = arith.constant 0 : index
    %85 = vector.load %arg3[%c432, %c0_36] : memref<560x512xf32, #tpu.memory_space<vmem>>, vector<128x512xf32>
    %86 = vector.extract_strided_slice %73 {offsets = [24, 0], sizes = [8, 128], strides = [1, 1]} : vector<32x128xf32> to vector<8x128xf32>
    %cst_37 = arith.constant dense<0.000000e+00> : vector<8x512xf32>
    %87 = tpu.matmul %86, %85, %cst_37 {dimension_numbers = #tpu.dot_dimension_numbers<[1], [0], [0], [1], [0, 0, 1, 1], [], []>} : vector<8x128xf32>, vector<128x512xf32>, vector<8x512xf32> -> vector<8x512xf32>
    %88 = arith.addf %84, %87 : vector<8x512xf32>
    %cst_38 = arith.constant 0.000000e+00 : f32
    %89 = vector.broadcast %cst_38 : f32 to vector<8x512xf32>
    %90 = arith.maximumf %88, %89 : vector<8x512xf32>
    %c0_39 = arith.constant 0 : index
    %c0_40 = arith.constant 0 : index
    %91 = vector.load %arg4[%c0_39, %c0_40] : memref<8x512xf32, #tpu.memory_space<vmem>>, vector<8x512xf32>
    tpu.vector_store %arg4[%c0_39, %c0_40], %90 {strides = array<i32>} : memref<8x512xf32, #tpu.memory_space<vmem>>, vector<8x512xf32>,
    return
  }
  func.func @transform_0(%arg0: i32) -> (i32, i32) {
    %c0_i32 = arith.constant 0 : i32
    %c0_i32_0 = arith.constant 0 : i32
    %c0_i32_1 = arith.constant 0 : i32
    return %c0_i32, %c0_i32_0 : i32, i32
  }
  func.func @transform_1(%arg0: i32) -> (i32, i32) {
    %c0_i32 = arith.constant 0 : i32
    %c0_i32_0 = arith.constant 0 : i32
    %c0_i32_1 = arith.constant 0 : i32
    return %c0_i32, %c0_i32_0 : i32, i32
  }
  func.func @transform_2(%arg0: i32) -> (i32, i32) {
    %c0_i32 = arith.constant 0 : i32
    %c0_i32_0 = arith.constant 0 : i32
    %c0_i32_1 = arith.constant 0 : i32
    return %c0_i32, %c0_i32_0 : i32, i32
  }
  func.func @transform_3(%arg0: i32) -> (i32, i32) {
    %c0_i32 = arith.constant 0 : i32
    %c0_i32_0 = arith.constant 0 : i32
    %c0_i32_1 = arith.constant 0 : i32
    return %c0_i32, %c0_i32_0 : i32, i32
  }
}

</mosaic_0001>

<llo_original>
// kernel: tpu_custom_call.1
$region0: #{tpu_custom_call.1}
  #allocation0 [shape = 'u32[]', space=smem, size = 0x4, offset = 0x4, fixed_abs, tag = 'smem constant byte address 0x4 - core index']
  #allocation1 [shape = 'u32[72,128]{1,0:T(1,128)}', space=vmem, size = 0x9000, scoped, tag = 'internal scratch']
  %s0 = inlined_call_operand.hbm [shape: f32[8,32], index: 0, kind: input, shape index: {}]
  %s1 = inlined_call_operand.hbm [shape: f32[168,128], index: 1, kind: input, shape index: {}]
  %s2 = inlined_call_operand.hbm [shape: f32[560,512], index: 2, kind: input, shape index: {}]
  %s3 = inlined_call_operand.hbm [shape: f32[8,512], index: 3, kind: output, shape index: {}]
  %s4 = sld [smem:[#allocation0]]
  $region34: #{tpu_custom_call.1} parent=0
    _
  %s6 = ssub.s32 1, %s4
  %s7 = scalar_select 0, %s6, %s4
  $region1: #{tpu_custom_call.1} parent=0
    #allocation2 [shape = 'u8[4096]{0}', space=vmem, size = 0x1000, scoped, tag = 'input window, operand 0, single buffered']
    #allocation3 [shape = 's32[1]{0}', space=sflag, size = 0x4, scoped, tag = 'scoped memory for tpu_custom_call.1']
    #allocation4 [shape = 's32[1]{0}', space=sflag, size = 0x4, scoped, tag = 'scoped memory for tpu_custom_call.1']
    #allocation5 [shape = 'u8[86016]{0}', space=vmem, size = 0x15000, scoped, tag = 'input window, operand 1, single buffered']
    #allocation6 [shape = 's32[1]{0}', space=sflag, size = 0x4, scoped, tag = 'scoped memory for tpu_custom_call.1']
    #allocation7 [shape = 'u8[1146880]{0}', space=vmem, size = 0x118000, scoped, tag = 'input window, operand 2, single buffered']
    #allocation8 [shape = 'u8[16384]{0}', space=vmem, size = 0x4000, scoped, tag = 'output window, operand 0, single buffered']
    %8 = vsyncpa [#allocation3], 0
    %9 = vsyncpa [#allocation6], 0
    %10 = vsyncpa [#allocation4], 0
    // Predicated region
    $region2: #{tpu_custom_call.1} parent=1 // pred_check
      _
    $region3: #{tpu_custom_call.1} parent=1 // pred_check_branch
      %12 = sbr.rel (0) target = $region5
    $region4: #{tpu_custom_call.1} parent=1 // pred_region
      %14 = vsyncadd [#allocation3], 0
      %s16 = sshll.u32 %s0, 4
      %s17 = int_to_ptr.hbm [resolvable:$true] %s16
      %s18 = sshll.u32 [#allocation2], 4
      %s19 = int_to_ptr.vmem [resolvable:$true] %s18
      %21 = dma.hbm_to_vmem [thread:$0]  %s17, 128, %s19, [#allocation3]
    $region5: #{tpu_custom_call.1} parent=1 // pred_fallthru
      _
    // Predicated region
    $region6: #{tpu_custom_call.1} parent=1 // pred_check
      _
    $region7: #{tpu_custom_call.1} parent=1 // pred_check_branch
      %23 = sbr.rel (0) target = $region9
    $region8: #{tpu_custom_call.1} parent=1 // pred_region
      %25 = vsyncadd [#allocation6], 0
      %s26 = sshll.u32 %s1, 4
      %s27 = int_to_ptr.hbm [resolvable:$true] %s26
      %s28 = sshll.u32 [#allocation5], 4
      %s29 = int_to_ptr.vmem [resolvable:$true] %s28
      %34 = dma.hbm_to_vmem [thread:$0]  %s27, 2688, %s29, [#allocation6], 128, 128, 8
    $region9: #{tpu_custom_call.1} parent=1 // pred_fallthru
      _
    // Predicated region
    $region10: #{tpu_custom_call.1} parent=1 // pred_check
      _
    $region11: #{tpu_custom_call.1} parent=1 // pred_check_branch
      %36 = sbr.rel (0) target = $region13
    $region12: #{tpu_custom_call.1} parent=1 // pred_region
      %38 = vsyncadd [#allocation6], 0
      %s39 = sshll.u32 %s2, 4
      %s40 = int_to_ptr.hbm [resolvable:$true] %s39
      %s41 = sshll.u32 [#allocation7], 4
      %s42 = int_to_ptr.vmem [resolvable:$true] %s41
      %47 = dma.hbm_to_vmem [thread:$0]  %s40, 35840, %s42, [#allocation6], 512, 512, 32
    $region13: #{tpu_custom_call.1} parent=1 // pred_fallthru
      _
    // Predicated region
    $region14: #{tpu_custom_call.1} parent=1 // pred_check
      _
    $region15: #{tpu_custom_call.1} parent=1 // pred_check_branch
      %49 = sbr.rel (0) target = $region17
    $region16: #{tpu_custom_call.1} parent=1 // pred_region
      %51 = dma.done [#allocation3], 128
    $region17: #{tpu_custom_call.1} parent=1 // pred_fallthru
      _
    // Predicated region
    $region18: #{tpu_custom_call.1} parent=1 // pred_check
      _
    $region19: #{tpu_custom_call.1} parent=1 // pred_check_branch
      %53 = sbr.rel (0) target = $region21
    $region20: #{tpu_custom_call.1} parent=1 // pred_region
      %55 = dma.done [#allocation6], 2688
    $region21: #{tpu_custom_call.1} parent=1 // pred_fallthru
      _
    // Predicated region
    $region22: #{tpu_custom_call.1} parent=1 // pred_check
      _
    $region23: #{tpu_custom_call.1} parent=1 // pred_check_branch
      %57 = sbr.rel (0) target = $region25
    $region24: #{tpu_custom_call.1} parent=1 // pred_region
      %59 = dma.done [#allocation6], 35840
    $region25: #{tpu_custom_call.1} parent=1 // pred_fallthru
      _
    %v60 = vld [vmem:[#allocation2] sm:$0xff]
    %v61 = vld [vmem:[#allocation5] sm:$0xff]
    %v62 = vld [vmem:[#allocation5 + $0x8] sm:$0xff]
    %v63 = vld [vmem:[#allocation5 + $0x10] sm:$0xff]
    %v64 = vld [vmem:[#allocation5 + $0x18] sm:$0xff]
    %66 = vrot.lane.b32.xlu0 %v60, 97
    %v67 = vpop.permute.xlu0 %66
    %69 = vrot.lane.b32.xlu0 %v60, 1
    %v70 = vpop.permute.xlu0 %69
    %vm72 = vcmask 7168
    %v73 = vsel %vm72, %v67, %v70
    %v74 = vld [vmem:[#allocation5 + $0x21] sm:$0x1]
    %v75 = vperm.slane %v74, 0
    %v76 = vmul.f32 %v73, %v75
    %77 = vrot.lane.b32.xlu0 %v60, 100
    %v78 = vpop.permute.xlu0 %77
    %80 = vrot.lane.b32.xlu0 %v60, 4
    %v81 = vpop.permute.xlu0 %80
    %vm83 = vcmask 31744
    %v84 = vsel %vm83, %v78, %v81
    %v85 = vld [vmem:[#allocation5 + $0x22] sm:$0x1]
    %v86 = vperm.slane %v85, 0
    %v87 = vmul.f32 %v84, %v86
    %88 = vrot.lane.b32.xlu0 %v60, 101
    %v89 = vpop.permute.xlu0 %88
    %91 = vrot.lane.b32.xlu0 %v60, 5
    %v92 = vpop.permute.xlu0 %91
    %vm94 = vcmask 39936
    %v95 = vsel %vm94, %v89, %v92
    %v96 = vld [vmem:[#allocation5 + $0x23] sm:$0x1]
    %v97 = vperm.slane %v96, 0
    %v98 = vmul.f32 %v95, %v97
    %vm99 = vcmask 261120
    %v101 = vsel %vm99, %v61, 0
    %v104 = vsel %vm99, %v62, 0
    %v107 = vsel %vm99, %v63, 0
    %v110 = vsel %vm99, %v64, 0
    %112 = vmatpush.msra.mxu0 0.0
    %113 = vmatpush.msra.mxu0 0.0
    %114 = vmatpush.msra.mxu0 0.0
    %115 = vmatpush.msra.mxu0 0.0
    %116 = vmatpush.msra.mxu0 0.0
    %117 = vmatpush.msra.mxu0 0.0
    %118 = vmatpush.msra.mxu0 0.0
    %119 = vmatpush.msra.mxu0 0.0
    %120 = vmatpush.msra.mxu0 0.0
    %121 = vmatpush.msra.mxu0 0.0
    %122 = vmatpush.msra.mxu0 0.0
    %123 = vmatpush.msra.mxu0 0.0
    %124 = vmatpush.msra.mxu0 %v98
    %125 = vmatpush.msra.mxu0 %v87
    %126 = vmatpush.msra.mxu0 %v76
    %127 = vmatpush.msra.mxu0 %v60
    %128 = vmatmul.f32.gmra.mxu0 %v101
    %v129 = vpop.f32.mrf.mxu0
    %v130 = vadd.f32 0.0, %v129
    %131 = vmatmul.f32.gmra.mxu0 %v104
    %v132 = vpop.f32.mrf.mxu0
    %v133 = vadd.f32 0.0, %v132
    %134 = vmatmul.f32.gmra.mxu0 %v107
    %v135 = vpop.f32.mrf.mxu0
    %v136 = vadd.f32 0.0, %v135
    %137 = vmatmul.f32.gmra.mxu0 %v110
    %v138 = vpop.f32.mrf.mxu0
    %v139 = vadd.f32 0.0, %v138
    %140 = vdwg.mxu0
    %v141 = vld [vmem:[#allocation5 + $0x28] sm:$0xff]
    %v142 = vld [vmem:[#allocation5 + $0x30] sm:$0xff]
    %v143 = vld [vmem:[#allocation5 + $0x38] sm:$0xff]
    %v144 = vld [vmem:[#allocation5 + $0x40] sm:$0xff]
    %v145 = vld [vmem:[#allocation5 + $0x48] sm:$0xff]
    %v146 = vld [vmem:[#allocation5 + $0x50] sm:$0xff]
    %v147 = vld [vmem:[#allocation5 + $0x58] sm:$0xff]
    %v148 = vld [vmem:[#allocation5 + $0x60] sm:$0xff]
    %v150 = vsel %vm99, %v133, 0
    %152 = vmatpush.msra.mxu0 0.0
    %153 = vmatpush.msra.mxu0 0.0
    %154 = vmatpush.msra.mxu0 0.0
    %155 = vmatpush.msra.mxu0 0.0
    %156 = vmatpush.msra.mxu0 0.0
    %157 = vmatpush.msra.mxu0 0.0
    %158 = vmatpush.msra.mxu0 0.0
    %159 = vmatpush.msra.mxu0 0.0
    %160 = vmatpush.msra.mxu0 0.0
    %161 = vmatpush.msra.mxu0 0.0
    %162 = vmatpush.msra.mxu0 0.0
    %163 = vmatpush.msra.mxu0 0.0
    %164 = vmatpush.msra.mxu0 %v148
    %165 = vmatpush.msra.mxu0 %v147
    %166 = vmatpush.msra.mxu0 %v146
    %167 = vmatpush.msra.mxu0 %v145
    %168 = vmatmul.f32.gmra.mxu0 %v150
    %v169 = vpop.f32.mrf.mxu0
    %v170 = vadd.f32 0.0, %v169
    %171 = vdwg.mxu0
    %v173 = vsel %vm99, %v130, 0
    %175 = vmatpush.msra.mxu0 0.0
    %176 = vmatpush.msra.mxu0 0.0
    %177 = vmatpush.msra.mxu0 0.0
    %178 = vmatpush.msra.mxu0 0.0
    %179 = vmatpush.msra.mxu0 0.0
    %180 = vmatpush.msra.mxu0 0.0
    %181 = vmatpush.msra.mxu0 0.0
    %182 = vmatpush.msra.mxu0 0.0
    %183 = vmatpush.msra.mxu0 0.0
    %184 = vmatpush.msra.mxu0 0.0
    %185 = vmatpush.msra.mxu0 0.0
    %186 = vmatpush.msra.mxu0 0.0
    %187 = vmatpush.msra.mxu0 %v144
    %188 = vmatpush.msra.mxu0 %v143
    %189 = vmatpush.msra.mxu0 %v142
    %190 = vmatpush.msra.mxu0 %v141
    %191 = vmatmul.f32.gmra.mxu0 %v173
    %v192 = vpop.f32.mrf.mxu0
    %v193 = vadd.f32 %v170, %v192
    %194 = vdwg.mxu0
    %v195 = vld [vmem:[#allocation5 + $0x68] sm:$0xff]
    %v196 = vld [vmem:[#allocation5 + $0x70] sm:$0xff]
    %v197 = vld [vmem:[#allocation5 + $0x78] sm:$0xff]
    %v198 = vld [vmem:[#allocation5 + $0x80] sm:$0xff]
    %v200 = vsel %vm99, %v136, 0
    %202 = vmatpush.msra.mxu0 0.0
    %203 = vmatpush.msra.mxu0 0.0
    %204 = vmatpush.msra.mxu0 0.0
    %205 = vmatpush.msra.mxu0 0.0
    %206 = vmatpush.msra.mxu0 0.0
    %207 = vmatpush.msra.mxu0 0.0
    %208 = vmatpush.msra.mxu0 0.0
    %209 = vmatpush.msra.mxu0 0.0
    %210 = vmatpush.msra.mxu0 0.0
    %211 = vmatpush.msra.mxu0 0.0
    %212 = vmatpush.msra.mxu0 0.0
    %213 = vmatpush.msra.mxu0 0.0
    %214 = vmatpush.msra.mxu0 %v198
    %215 = vmatpush.msra.mxu0 %v197
    %216 = vmatpush.msra.mxu0 %v196
    %217 = vmatpush.msra.mxu0 %v195
    %218 = vmatmul.f32.gmra.mxu0 %v200
    %v219 = vpop.f32.mrf.mxu0
    %v220 = vadd.f32 0.0, %v219
    %221 = vdwg.mxu0
    %v222 = vadd.f32 %v193, %v220
    %v223 = vld [vmem:[#allocation5 + $0x88] sm:$0xff]
    %v224 = vld [vmem:[#allocation5 + $0x90] sm:$0xff]
    %v225 = vld [vmem:[#allocation5 + $0x98] sm:$0xff]
    %v226 = vld [vmem:[#allocation5 + $0xa0] sm:$0xff]
    %v228 = vsel %vm99, %v139, 0
    %230 = vmatpush.msra.mxu0 0.0
    %231 = vmatpush.msra.mxu0 0.0
    %232 = vmatpush.msra.mxu0 0.0
    %233 = vmatpush.msra.mxu0 0.0
    %234 = vmatpush.msra.mxu0 0.0
    %235 = vmatpush.msra.mxu0 0.0
    %236 = vmatpush.msra.mxu0 0.0
    %237 = vmatpush.msra.mxu0 0.0
    %238 = vmatpush.msra.mxu0 0.0
    %239 = vmatpush.msra.mxu0 0.0
    %240 = vmatpush.msra.mxu0 0.0
    %241 = vmatpush.msra.mxu0 0.0
    %242 = vmatpush.msra.mxu0 %v226
    %243 = vmatpush.msra.mxu0 %v225
    %244 = vmatpush.msra.mxu0 %v224
    %245 = vmatpush.msra.mxu0 %v223
    %246 = vmatmul.f32.gmra.mxu0 %v228
    %v247 = vpop.f32.mrf.mxu0
    %v248 = vadd.f32 0.0, %v247
    %249 = vdwg.mxu0
    %v250 = vadd.f32 %v222, %v248
    %v251 = vmax.f32 %v250, 0.0
    %v252 = vld [vmem:[#allocation7] sm:$0xff]
    %v253 = vld [vmem:[#allocation7 + $0x20] sm:$0xff]
    %v254 = vld [vmem:[#allocation7 + $0x40] sm:$0xff]
    %v255 = vld [vmem:[#allocation7 + $0x60] sm:$0xff]
    %256 = vrot.lane.b32.xlu0 %v251, 119
    %v257 = vpop.permute.xlu0 %256
    %v258 = vld [vmem:[#allocation7 + $0x80] ss:$0 sm:$0xff]
    %v259 = vmul.f32 %v257, %v258
    %260 = vrot.lane.b32.xlu0 %v251, 120
    %v261 = vpop.permute.xlu0 %260
    %v262 = vld [vmem:[#allocation7 + $0x81] ss:$0 sm:$0xff]
    %v263 = vmul.f32 %v261, %v262
    %264 = vrot.lane.b32.xlu0 %v251, 121
    %v265 = vpop.permute.xlu0 %264
    %v266 = vld [vmem:[#allocation7 + $0x82] ss:$0 sm:$0xff]
    %v267 = vmul.f32 %v265, %v266
    %268 = vrot.lane.b32.xlu0 %v251, 127
    %v269 = vpop.permute.xlu0 %268
    %v270 = vld [vmem:[#allocation7 + $0x83] ss:$0 sm:$0xff]
    %v271 = vmul.f32 %v269, %v270
    %272 = vrot.lane.b32.xlu0 %v251, 1
    %v273 = vpop.permute.xlu0 %272
    %v274 = vld [vmem:[#allocation7 + $0x85] ss:$0 sm:$0xff]
    %v275 = vmul.f32 %v273, %v274
    %276 = vrot.lane.b32.xlu0 %v251, 7
    %v277 = vpop.permute.xlu0 %276
    %v278 = vld [vmem:[#allocation7 + $0x86] ss:$0 sm:$0xff]
    %v279 = vmul.f32 %v277, %v278
    %280 = vrot.lane.b32.xlu0 %v251, 8
    %v281 = vpop.permute.xlu0 %280
    %v282 = vld [vmem:[#allocation7 + $0x87] ss:$0 sm:$0xff]
    %v283 = vmul.f32 %v281, %v282
    %284 = vrot.lane.b32.xlu0 %v251, 9
    %v285 = vpop.permute.xlu0 %284
    %v286 = vld [vmem:[#allocation7 + $0xa0] ss:$0 sm:$0xff]
    %v287 = vmul.f32 %v285, %v286
    %vm288 = vcmask 588800
    %v290 = vsel %vm288, %v252, 0
    %v293 = vsel %vm288, %v253, 0
    %v296 = vsel %vm288, %v254, 0
    %v299 = vsel %vm288, %v255, 0
    %301 = vmatpush.msra.mxu0 0.0
    %302 = vmatpush.msra.mxu0 0.0
    %303 = vmatpush.msra.mxu0 0.0
    %304 = vmatpush.msra.mxu0 0.0
    %305 = vmatpush.msra.mxu0 0.0
    %306 = vmatpush.msra.mxu0 0.0
    %307 = vmatpush.msra.mxu0 0.0
    %308 = vmatpush.msra.mxu0 %v287
    %309 = vmatpush.msra.mxu0 %v283
    %310 = vmatpush.msra.mxu0 %v279
    %311 = vmatpush.msra.mxu0 %v275
    %312 = vmatpush.msra.mxu0 %v251
    %313 = vmatpush.msra.mxu0 %v271
    %314 = vmatpush.msra.mxu0 %v267
    %315 = vmatpush.msra.mxu0 %v263
    %316 = vmatpush.msra.mxu0 %v259
    %317 = vmatmul.f32.gmra.mxu0 %v290
    %v318 = vpop.f32.mrf.mxu0
    %v319 = vadd.f32 0.0, %v318
    %320 = vmatmul.f32.gmra.mxu0 %v293
    %v321 = vpop.f32.mrf.mxu0
    %v322 = vadd.f32 0.0, %v321
    %323 = vmatmul.f32.gmra.mxu0 %v296
    %v324 = vpop.f32.mrf.mxu0
    %v325 = vadd.f32 0.0, %v324
    %326 = vmatmul.f32.gmra.mxu0 %v299
    %v327 = vpop.f32.mrf.mxu0
    %v328 = vadd.f32 0.0, %v327
    %329 = vdwg.mxu0
    %v330 = vld [vmem:[#allocation7 + $0xc0] sm:$0xff]
    %v331 = vld [vmem:[#allocation7 + $0xc8] sm:$0xff]
    %v332 = vld [vmem:[#allocation7 + $0xd0] sm:$0xff]
    %v333 = vld [vmem:[#allocation7 + $0xd8] sm:$0xff]
    %v334 = vld [vmem:[#allocation7 + $0xe0] sm:$0xff]
    %v335 = vld [vmem:[#allocation7 + $0xe8] sm:$0xff]
    %v336 = vld [vmem:[#allocation7 + $0xf0] sm:$0xff]
    %v337 = vld [vmem:[#allocation7 + $0xf8] sm:$0xff]
    %v338 = vld [vmem:[#allocation7 + $0x100] sm:$0xff]
    %v339 = vld [vmem:[#allocation7 + $0x108] sm:$0xff]
    %v340 = vld [vmem:[#allocation7 + $0x110] sm:$0xff]
    %v341 = vld [vmem:[#allocation7 + $0x118] sm:$0xff]
    %v342 = vld [vmem:[#allocation7 + $0x120] sm:$0xff]
    %v343 = vld [vmem:[#allocation7 + $0x128] sm:$0xff]
    %v344 = vld [vmem:[#allocation7 + $0x130] sm:$0xff]
    %v345 = vld [vmem:[#allocation7 + $0x138] sm:$0xff]
    %v346 = vld [vmem:[#allocation7 + $0x140] sm:$0xff]
    %v347 = vld [vmem:[#allocation7 + $0x148] sm:$0xff]
    %v348 = vld [vmem:[#allocation7 + $0x150] sm:$0xff]
    %v349 = vld [vmem:[#allocation7 + $0x158] sm:$0xff]
    %v350 = vld [vmem:[#allocation7 + $0x160] sm:$0xff]
    %v351 = vld [vmem:[#allocation7 + $0x168] sm:$0xff]
    %v352 = vld [vmem:[#allocation7 + $0x170] sm:$0xff]
    %v353 = vld [vmem:[#allocation7 + $0x178] sm:$0xff]
    %v354 = vld [vmem:[#allocation7 + $0x180] sm:$0xff]
    %v355 = vld [vmem:[#allocation7 + $0x188] sm:$0xff]
    %v356 = vld [vmem:[#allocation7 + $0x190] sm:$0xff]
    %v357 = vld [vmem:[#allocation7 + $0x198] sm:$0xff]
    %v358 = vld [vmem:[#allocation7 + $0x1a0] sm:$0xff]
    %v359 = vld [vmem:[#allocation7 + $0x1a8] sm:$0xff]
    %v360 = vld [vmem:[#allocation7 + $0x1b0] sm:$0xff]
    %v361 = vld [vmem:[#allocation7 + $0x1b8] sm:$0xff]
    %v362 = vld [vmem:[#allocation7 + $0x1c0] sm:$0xff]
    %v363 = vld [vmem:[#allocation7 + $0x1c8] sm:$0xff]
    %v364 = vld [vmem:[#allocation7 + $0x1d0] sm:$0xff]
    %v365 = vld [vmem:[#allocation7 + $0x1d8] sm:$0xff]
    %v366 = vld [vmem:[#allocation7 + $0x1e0] sm:$0xff]
    %v367 = vld [vmem:[#allocation7 + $0x1e8] sm:$0xff]
    %v368 = vld [vmem:[#allocation7 + $0x1f0] sm:$0xff]
    %v369 = vld [vmem:[#allocation7 + $0x1f8] sm:$0xff]
    %v370 = vld [vmem:[#allocation7 + $0x200] sm:$0xff]
    %v371 = vld [vmem:[#allocation7 + $0x208] sm:$0xff]
    %v372 = vld [vmem:[#allocation7 + $0x210] sm:$0xff]
    %v373 = vld [vmem:[#allocation7 + $0x218] sm:$0xff]
    %v374 = vld [vmem:[#allocation7 + $0x220] sm:$0xff]
    %v375 = vld [vmem:[#allocation7 + $0x228] sm:$0xff]
    %v376 = vld [vmem:[#allocation7 + $0x230] sm:$0xff]
    %v377 = vld [vmem:[#allocation7 + $0x238] sm:$0xff]
    %v378 = vld [vmem:[#allocation7 + $0x240] sm:$0xff]
    %v379 = vld [vmem:[#allocation7 + $0x248] sm:$0xff]
    %v380 = vld [vmem:[#allocation7 + $0x250] sm:$0xff]
    %v381 = vld [vmem:[#allocation7 + $0x258] sm:$0xff]
    %v382 = vld [vmem:[#allocation7 + $0x260] sm:$0xff]
    %v383 = vld [vmem:[#allocation7 + $0x268] sm:$0xff]
    %v384 = vld [vmem:[#allocation7 + $0x270] sm:$0xff]
    %v385 = vld [vmem:[#allocation7 + $0x278] sm:$0xff]
    %v386 = vld [vmem:[#allocation7 + $0x280] sm:$0xff]
    %v387 = vld [vmem:[#allocation7 + $0x288] sm:$0xff]
    %v388 = vld [vmem:[#allocation7 + $0x290] sm:$0xff]
    %v389 = vld [vmem:[#allocation7 + $0x298] sm:$0xff]
    %v390 = vld [vmem:[#allocation7 + $0x2a0] sm:$0xff]
    %v391 = vld [vmem:[#allocation7 + $0x2a8] sm:$0xff]
    %v392 = vld [vmem:[#allocation7 + $0x2b0] sm:$0xff]
    %v393 = vld [vmem:[#allocation7 + $0x2b8] sm:$0xff]
    %v394 = vld [vmem:[#allocation7 + $0x2c0] sm:$0xff]
    %v395 = vld [vmem:[#allocation7 + $0x2c8] sm:$0xff]
    %v396 = vld [vmem:[#allocation7 + $0x2d0] sm:$0xff]
    %v397 = vld [vmem:[#allocation7 + $0x2d8] sm:$0xff]
    %v398 = vld [vmem:[#allocation7 + $0x2e0] sm:$0xff]
    %v399 = vld [vmem:[#allocation7 + $0x2e8] sm:$0xff]
    %v400 = vld [vmem:[#allocation7 + $0x2f0] sm:$0xff]
    %v401 = vld [vmem:[#allocation7 + $0x2f8] sm:$0xff]
    %v402 = vld [vmem:[#allocation7 + $0x300] sm:$0xff]
    %v403 = vld [vmem:[#allocation7 + $0x308] sm:$0xff]
    %v404 = vld [vmem:[#allocation7 + $0x310] sm:$0xff]
    %v405 = vld [vmem:[#allocation7 + $0x318] sm:$0xff]
    %v406 = vld [vmem:[#allocation7 + $0x320] sm:$0xff]
    %v407 = vld [vmem:[#allocation7 + $0x328] sm:$0xff]
    %v408 = vld [vmem:[#allocation7 + $0x330] sm:$0xff]
    %v409 = vld [vmem:[#allocation7 + $0x338] sm:$0xff]
    %v410 = vld [vmem:[#allocation7 + $0x340] sm:$0xff]
    %v411 = vld [vmem:[#allocation7 + $0x348] sm:$0xff]
    %v412 = vld [vmem:[#allocation7 + $0x350] sm:$0xff]
    %v413 = vld [vmem:[#allocation7 + $0x358] sm:$0xff]
    %v414 = vld [vmem:[#allocation7 + $0x360] sm:$0xff]
    %v415 = vld [vmem:[#allocation7 + $0x368] sm:$0xff]
    %v416 = vld [vmem:[#allocation7 + $0x370] sm:$0xff]
    %v417 = vld [vmem:[#allocation7 + $0x378] sm:$0xff]
    %v418 = vld [vmem:[#allocation7 + $0x380] sm:$0xff]
    %v419 = vld [vmem:[#allocation7 + $0x388] sm:$0xff]
    %v420 = vld [vmem:[#allocation7 + $0x390] sm:$0xff]
    %v421 = vld [vmem:[#allocation7 + $0x398] sm:$0xff]
    %v422 = vld [vmem:[#allocation7 + $0x3a0] sm:$0xff]
    %v423 = vld [vmem:[#allocation7 + $0x3a8] sm:$0xff]
    %v424 = vld [vmem:[#allocation7 + $0x3b0] sm:$0xff]
    %v425 = vld [vmem:[#allocation7 + $0x3b8] sm:$0xff]
    %v426 = vld [vmem:[#allocation7 + $0x3c0] sm:$0xff]
    %v427 = vld [vmem:[#allocation7 + $0x3c8] sm:$0xff]
    %v428 = vld [vmem:[#allocation7 + $0x3d0] sm:$0xff]
    %v429 = vld [vmem:[#allocation7 + $0x3d8] sm:$0xff]
    %v430 = vld [vmem:[#allocation7 + $0x3e0] sm:$0xff]
    %v431 = vld [vmem:[#allocation7 + $0x3e8] sm:$0xff]
    %v432 = vld [vmem:[#allocation7 + $0x3f0] sm:$0xff]
    %v433 = vld [vmem:[#allocation7 + $0x3f8] sm:$0xff]
    %v434 = vld [vmem:[#allocation7 + $0x400] sm:$0xff]
    %v435 = vld [vmem:[#allocation7 + $0x408] sm:$0xff]
    %v436 = vld [vmem:[#allocation7 + $0x410] sm:$0xff]
    %v437 = vld [vmem:[#allocation7 + $0x418] sm:$0xff]
    %v438 = vld [vmem:[#allocation7 + $0x420] sm:$0xff]
    %v439 = vld [vmem:[#allocation7 + $0x428] sm:$0xff]
    %v440 = vld [vmem:[#allocation7 + $0x430] sm:$0xff]
    %v441 = vld [vmem:[#allocation7 + $0x438] sm:$0xff]
    %v442 = vld [vmem:[#allocation7 + $0x440] sm:$0xff]
    %v443 = vld [vmem:[#allocation7 + $0x448] sm:$0xff]
    %v444 = vld [vmem:[#allocation7 + $0x450] sm:$0xff]
    %v445 = vld [vmem:[#allocation7 + $0x458] sm:$0xff]
    %v446 = vld [vmem:[#allocation7 + $0x460] sm:$0xff]
    %v447 = vld [vmem:[#allocation7 + $0x468] sm:$0xff]
    %v448 = vld [vmem:[#allocation7 + $0x470] sm:$0xff]
    %v449 = vld [vmem:[#allocation7 + $0x478] sm:$0xff]
    %v450 = vld [vmem:[#allocation7 + $0x480] sm:$0xff]
    %v451 = vld [vmem:[#allocation7 + $0x488] sm:$0xff]
    %v452 = vld [vmem:[#allocation7 + $0x490] sm:$0xff]
    %v453 = vld [vmem:[#allocation7 + $0x498] sm:$0xff]
    %v454 = vld [vmem:[#allocation7 + $0x4a0] sm:$0xff]
    %v455 = vld [vmem:[#allocation7 + $0x4a8] sm:$0xff]
    %v456 = vld [vmem:[#allocation7 + $0x4b0] sm:$0xff]
    %v457 = vld [vmem:[#allocation7 + $0x4b8] sm:$0xff]
    %458 = vmatpush.msra.mxu0 %v454
    %459 = vmatpush.msra.mxu0 %v450
    %460 = vmatpush.msra.mxu0 %v446
    %461 = vmatpush.msra.mxu0 %v442
    %462 = vmatpush.msra.mxu0 %v438
    %463 = vmatpush.msra.mxu0 %v434
    %464 = vmatpush.msra.mxu0 %v430
    %465 = vmatpush.msra.mxu0 %v426
    %466 = vmatpush.msra.mxu0 %v422
    %467 = vmatpush.msra.mxu0 %v418
    %468 = vmatpush.msra.mxu0 %v414
    %469 = vmatpush.msra.mxu0 %v410
    %470 = vmatpush.msra.mxu0 %v406
    %471 = vmatpush.msra.mxu0 %v402
    %472 = vmatpush.msra.mxu0 %v398
    %473 = vmatpush.msra.mxu0 %v394
    %474 = vmatmul.f32.gmra.mxu0 %v322
    %v475 = vpop.f32.mrf.mxu0
    %v476 = vadd.f32 0.0, %v475
    %477 = vdwg.mxu0
    %478 = vmatpush.msra.mxu0 %v455
    %479 = vmatpush.msra.mxu0 %v451
    %480 = vmatpush.msra.mxu0 %v447
    %481 = vmatpush.msra.mxu0 %v443
    %482 = vmatpush.msra.mxu0 %v439
    %483 = vmatpush.msra.mxu0 %v435
    %484 = vmatpush.msra.mxu0 %v431
    %485 = vmatpush.msra.mxu0 %v427
    %486 = vmatpush.msra.mxu0 %v423
    %487 = vmatpush.msra.mxu0 %v419
    %488 = vmatpush.msra.mxu0 %v415
    %489 = vmatpush.msra.mxu0 %v411
    %490 = vmatpush.msra.mxu0 %v407
    %491 = vmatpush.msra.mxu0 %v403
    %492 = vmatpush.msra.mxu0 %v399
    %493 = vmatpush.msra.mxu0 %v395
    %494 = vmatmul.f32.gmra.mxu0 %v322
    %v495 = vpop.f32.mrf.mxu0
    %v496 = vadd.f32 0.0, %v495
    %497 = vdwg.mxu0
    %498 = vmatpush.msra.mxu0 %v456
    %499 = vmatpush.msra.mxu0 %v452
    %500 = vmatpush.msra.mxu0 %v448
    %501 = vmatpush.msra.mxu0 %v444
    %502 = vmatpush.msra.mxu0 %v440
    %503 = vmatpush.msra.mxu0 %v436
    %504 = vmatpush.msra.mxu0 %v432
    %505 = vmatpush.msra.mxu0 %v428
    %506 = vmatpush.msra.mxu0 %v424
    %507 = vmatpush.msra.mxu0 %v420
    %508 = vmatpush.msra.mxu0 %v416
    %509 = vmatpush.msra.mxu0 %v412
    %510 = vmatpush.msra.mxu0 %v408
    %511 = vmatpush.msra.mxu0 %v404
    %512 = vmatpush.msra.mxu0 %v400
    %513 = vmatpush.msra.mxu0 %v396
    %514 = vmatmul.f32.gmra.mxu0 %v322
    %v515 = vpop.f32.mrf.mxu0
    %v516 = vadd.f32 0.0, %v515
    %517 = vdwg.mxu0
    %518 = vmatpush.msra.mxu0 %v457
    %519 = vmatpush.msra.mxu0 %v453
    %520 = vmatpush.msra.mxu0 %v449
    %521 = vmatpush.msra.mxu0 %v445
    %522 = vmatpush.msra.mxu0 %v441
    %523 = vmatpush.msra.mxu0 %v437
    %524 = vmatpush.msra.mxu0 %v433
    %525 = vmatpush.msra.mxu0 %v429
    %526 = vmatpush.msra.mxu0 %v425
    %527 = vmatpush.msra.mxu0 %v421
    %528 = vmatpush.msra.mxu0 %v417
    %529 = vmatpush.msra.mxu0 %v413
    %530 = vmatpush.msra.mxu0 %v409
    %531 = vmatpush.msra.mxu0 %v405
    %532 = vmatpush.msra.mxu0 %v401
    %533 = vmatpush.msra.mxu0 %v397
    %534 = vmatmul.f32.gmra.mxu0 %v322
    %v535 = vpop.f32.mrf.mxu0
    %v536 = vadd.f32 0.0, %v535
    %537 = vdwg.mxu0
    %538 = vmatpush.msra.mxu0 %v390
    %539 = vmatpush.msra.mxu0 %v386
    %540 = vmatpush.msra.mxu0 %v382
    %541 = vmatpush.msra.mxu0 %v378
    %542 = vmatpush.msra.mxu0 %v374
    %543 = vmatpush.msra.mxu0 %v370
    %544 = vmatpush.msra.mxu0 %v366
    %545 = vmatpush.msra.mxu0 %v362
    %546 = vmatpush.msra.mxu0 %v358
    %547 = vmatpush.msra.mxu0 %v354
    %548 = vmatpush.msra.mxu0 %v350
    %549 = vmatpush.msra.mxu0 %v346
    %550 = vmatpush.msra.mxu0 %v342
    %551 = vmatpush.msra.mxu0 %v338
    %552 = vmatpush.msra.mxu0 %v334
    %553 = vmatpush.msra.mxu0 %v330
    %554 = vmatmul.f32.gmra.mxu0 %v319
    %v555 = vpop.f32.mrf.mxu0
    %v556 = vadd.f32 %v476, %v555
    %557 = vdwg.mxu0
    %558 = vmatpush.msra.mxu0 %v391
    %559 = vmatpush.msra.mxu0 %v387
    %560 = vmatpush.msra.mxu0 %v383
    %561 = vmatpush.msra.mxu0 %v379
    %562 = vmatpush.msra.mxu0 %v375
    %563 = vmatpush.msra.mxu0 %v371
    %564 = vmatpush.msra.mxu0 %v367
    %565 = vmatpush.msra.mxu0 %v363
    %566 = vmatpush.msra.mxu0 %v359
    %567 = vmatpush.msra.mxu0 %v355
    %568 = vmatpush.msra.mxu0 %v351
    %569 = vmatpush.msra.mxu0 %v347
    %570 = vmatpush.msra.mxu0 %v343
    %571 = vmatpush.msra.mxu0 %v339
    %572 = vmatpush.msra.mxu0 %v335
    %573 = vmatpush.msra.mxu0 %v331
    %574 = vmatmul.f32.gmra.mxu0 %v319
    %v575 = vpop.f32.mrf.mxu0
    %v576 = vadd.f32 %v496, %v575
    %577 = vdwg.mxu0
    %578 = vmatpush.msra.mxu0 %v392
    %579 = vmatpush.msra.mxu0 %v388
    %580 = vmatpush.msra.mxu0 %v384
    %581 = vmatpush.msra.mxu0 %v380
    %582 = vmatpush.msra.mxu0 %v376
    %583 = vmatpush.msra.mxu0 %v372
    %584 = vmatpush.msra.mxu0 %v368
    %585 = vmatpush.msra.mxu0 %v364
    %586 = vmatpush.msra.mxu0 %v360
    %587 = vmatpush.msra.mxu0 %v356
    %588 = vmatpush.msra.mxu0 %v352
    %589 = vmatpush.msra.mxu0 %v348
    %590 = vmatpush.msra.mxu0 %v344
    %591 = vmatpush.msra.mxu0 %v340
    %592 = vmatpush.msra.mxu0 %v336
    %593 = vmatpush.msra.mxu0 %v332
    %594 = vmatmul.f32.gmra.mxu0 %v319
    %v595 = vpop.f32.mrf.mxu0
    %v596 = vadd.f32 %v516, %v595
    %597 = vdwg.mxu0
    %598 = vmatpush.msra.mxu0 %v393
    %599 = vmatpush.msra.mxu0 %v389
    %600 = vmatpush.msra.mxu0 %v385
    %601 = vmatpush.msra.mxu0 %v381
    %602 = vmatpush.msra.mxu0 %v377
    %603 = vmatpush.msra.mxu0 %v373
    %604 = vmatpush.msra.mxu0 %v369
    %605 = vmatpush.msra.mxu0 %v365
    %606 = vmatpush.msra.mxu0 %v361
    %607 = vmatpush.msra.mxu0 %v357
    %608 = vmatpush.msra.mxu0 %v353
    %609 = vmatpush.msra.mxu0 %v349
    %610 = vmatpush.msra.mxu0 %v345
    %611 = vmatpush.msra.mxu0 %v341
    %612 = vmatpush.msra.mxu0 %v337
    %613 = vmatpush.msra.mxu0 %v333
    %614 = vmatmul.f32.gmra.mxu0 %v319
    %v615 = vpop.f32.mrf.mxu0
    %v616 = vadd.f32 %v536, %v615
    %617 = vdwg.mxu0
    %v618 = vld [vmem:[#allocation7 + $0x4c0] sm:$0xff]
    %v619 = vld [vmem:[#allocation7 + $0x4c8] sm:$0xff]
    %v620 = vld [vmem:[#allocation7 + $0x4d0] sm:$0xff]
    %v621 = vld [vmem:[#allocation7 + $0x4d8] sm:$0xff]
    %v622 = vld [vmem:[#allocation7 + $0x4e0] sm:$0xff]
    %v623 = vld [vmem:[#allocation7 + $0x4e8] sm:$0xff]
    %v624 = vld [vmem:[#allocation7 + $0x4f0] sm:$0xff]
    %v625 = vld [vmem:[#allocation7 + $0x4f8] sm:$0xff]
    %v626 = vld [vmem:[#allocation7 + $0x500] sm:$0xff]
    %v627 = vld [vmem:[#allocation7 + $0x508] sm:$0xff]
    %v628 = vld [vmem:[#allocation7 + $0x510] sm:$0xff]
    %v629 = vld [vmem:[#allocation7 + $0x518] sm:$0xff]
    %v630 = vld [vmem:[#allocation7 + $0x520] sm:$0xff]
    %v631 = vld [vmem:[#allocation7 + $0x528] sm:$0xff]
    %v632 = vld [vmem:[#allocation7 + $0x530] sm:$0xff]
    %v633 = vld [vmem:[#allocation7 + $0x538] sm:$0xff]
    %v634 = vld [vmem:[#allocation7 + $0x540] sm:$0xff]
    %v635 = vld [vmem:[#allocation7 + $0x548] sm:$0xff]
    %v636 = vld [vmem:[#allocation7 + $0x550] sm:$0xff]
    %v637 = vld [vmem:[#allocation7 + $0x558] sm:$0xff]
    %v638 = vld [vmem:[#allocation7 + $0x560] sm:$0xff]
    %v639 = vld [vmem:[#allocation7 + $0x568] sm:$0xff]
    %v640 = vld [vmem:[#allocation7 + $0x570] sm:$0xff]
    %v641 = vld [vmem:[#allocation7 + $0x578] sm:$0xff]
    %v642 = vld [vmem:[#allocation7 + $0x580] sm:$0xff]
    %v643 = vld [vmem:[#allocation7 + $0x588] sm:$0xff]
    %v644 = vld [vmem:[#allocation7 + $0x590] sm:$0xff]
    %v645 = vld [vmem:[#allocation7 + $0x598] sm:$0xff]
    %v646 = vld [vmem:[#allocation7 + $0x5a0] sm:$0xff]
    %v647 = vld [vmem:[#allocation7 + $0x5a8] sm:$0xff]
    %v648 = vld [vmem:[#allocation7 + $0x5b0] sm:$0xff]
    %v649 = vld [vmem:[#allocation7 + $0x5b8] sm:$0xff]
    %v650 = vld [vmem:[#allocation7 + $0x5c0] sm:$0xff]
    %v651 = vld [vmem:[#allocation7 + $0x5c8] sm:$0xff]
    %v652 = vld [vmem:[#allocation7 + $0x5d0] sm:$0xff]
    %v653 = vld [vmem:[#allocation7 + $0x5d8] sm:$0xff]
    %v654 = vld [vmem:[#allocation7 + $0x5e0] sm:$0xff]
    %v655 = vld [vmem:[#allocation7 + $0x5e8] sm:$0xff]
    %v656 = vld [vmem:[#allocation7 + $0x5f0] sm:$0xff]
    %v657 = vld [vmem:[#allocation7 + $0x5f8] sm:$0xff]
    %v658 = vld [vmem:[#allocation7 + $0x600] sm:$0xff]
    %v659 = vld [vmem:[#allocation7 + $0x608] sm:$0xff]
    %v660 = vld [vmem:[#allocation7 + $0x610] sm:$0xff]
    %v661 = vld [vmem:[#allocation7 + $0x618] sm:$0xff]
    %v662 = vld [vmem:[#allocation7 + $0x620] sm:$0xff]
    %v663 = vld [vmem:[#allocation7 + $0x628] sm:$0xff]
    %v664 = vld [vmem:[#allocation7 + $0x630] sm:$0xff]
    %v665 = vld [vmem:[#allocation7 + $0x638] sm:$0xff]
    %v666 = vld [vmem:[#allocation7 + $0x640] sm:$0xff]
    %v667 = vld [vmem:[#allocation7 + $0x648] sm:$0xff]
    %v668 = vld [vmem:[#allocation7 + $0x650] sm:$0xff]
    %v669 = vld [vmem:[#allocation7 + $0x658] sm:$0xff]
    %v670 = vld [vmem:[#allocation7 + $0x660] sm:$0xff]
    %v671 = vld [vmem:[#allocation7 + $0x668] sm:$0xff]
    %v672 = vld [vmem:[#allocation7 + $0x670] sm:$0xff]
    %v673 = vld [vmem:[#allocation7 + $0x678] sm:$0xff]
    %v674 = vld [vmem:[#allocation7 + $0x680] sm:$0xff]
    %v675 = vld [vmem:[#allocation7 + $0x688] sm:$0xff]
    %v676 = vld [vmem:[#allocation7 + $0x690] sm:$0xff]
    %v677 = vld [vmem:[#allocation7 + $0x698] sm:$0xff]
    %v678 = vld [vmem:[#allocation7 + $0x6a0] sm:$0xff]
    %v679 = vld [vmem:[#allocation7 + $0x6a8] sm:$0xff]
    %v680 = vld [vmem:[#allocation7 + $0x6b0] sm:$0xff]
    %v681 = vld [vmem:[#allocation7 + $0x6b8] sm:$0xff]
    %682 = vmatpush.msra.mxu0 %v678
    %683 = vmatpush.msra.mxu0 %v674
    %684 = vmatpush.msra.mxu0 %v670
    %685 = vmatpush.msra.mxu0 %v666
    %686 = vmatpush.msra.mxu0 %v662
    %687 = vmatpush.msra.mxu0 %v658
    %688 = vmatpush.msra.mxu0 %v654
    %689 = vmatpush.msra.mxu0 %v650
    %690 = vmatpush.msra.mxu0 %v646
    %691 = vmatpush.msra.mxu0 %v642
    %692 = vmatpush.msra.mxu0 %v638
    %693 = vmatpush.msra.mxu0 %v634
    %694 = vmatpush.msra.mxu0 %v630
    %695 = vmatpush.msra.mxu0 %v626
    %696 = vmatpush.msra.mxu0 %v622
    %697 = vmatpush.msra.mxu0 %v618
    %698 = vmatmul.f32.gmra.mxu0 %v325
    %v699 = vpop.f32.mrf.mxu0
    %v700 = vadd.f32 0.0, %v699
    %701 = vdwg.mxu0
    %702 = vmatpush.msra.mxu0 %v679
    %703 = vmatpush.msra.mxu0 %v675
    %704 = vmatpush.msra.mxu0 %v671
    %705 = vmatpush.msra.mxu0 %v667
    %706 = vmatpush.msra.mxu0 %v663
    %707 = vmatpush.msra.mxu0 %v659
    %708 = vmatpush.msra.mxu0 %v655
    %709 = vmatpush.msra.mxu0 %v651
    %710 = vmatpush.msra.mxu0 %v647
    %711 = vmatpush.msra.mxu0 %v643
    %712 = vmatpush.msra.mxu0 %v639
    %713 = vmatpush.msra.mxu0 %v635
    %714 = vmatpush.msra.mxu0 %v631
    %715 = vmatpush.msra.mxu0 %v627
    %716 = vmatpush.msra.mxu0 %v623
    %717 = vmatpush.msra.mxu0 %v619
    %718 = vmatmul.f32.gmra.mxu0 %v325
    %v719 = vpop.f32.mrf.mxu0
    %v720 = vadd.f32 0.0, %v719
    %721 = vdwg.mxu0
    %722 = vmatpush.msra.mxu0 %v680
    %723 = vmatpush.msra.mxu0 %v676
    %724 = vmatpush.msra.mxu0 %v672
    %725 = vmatpush.msra.mxu0 %v668
    %726 = vmatpush.msra.mxu0 %v664
    %727 = vmatpush.msra.mxu0 %v660
    %728 = vmatpush.msra.mxu0 %v656
    %729 = vmatpush.msra.mxu0 %v652
    %730 = vmatpush.msra.mxu0 %v648
    %731 = vmatpush.msra.mxu0 %v644
    %732 = vmatpush.msra.mxu0 %v640
    %733 = vmatpush.msra.mxu0 %v636
    %734 = vmatpush.msra.mxu0 %v632
    %735 = vmatpush.msra.mxu0 %v628
    %736 = vmatpush.msra.mxu0 %v624
    %737 = vmatpush.msra.mxu0 %v620
    %738 = vmatmul.f32.gmra.mxu0 %v325
    %v739 = vpop.f32.mrf.mxu0
    %v740 = vadd.f32 0.0, %v739
    %741 = vdwg.mxu0
    %742 = vmatpush.msra.mxu0 %v681
    %743 = vmatpush.msra.mxu0 %v677
    %744 = vmatpush.msra.mxu0 %v673
    %745 = vmatpush.msra.mxu0 %v669
    %746 = vmatpush.msra.mxu0 %v665
    %747 = vmatpush.msra.mxu0 %v661
    %748 = vmatpush.msra.mxu0 %v657
    %749 = vmatpush.msra.mxu0 %v653
    %750 = vmatpush.msra.mxu0 %v649
    %751 = vmatpush.msra.mxu0 %v645
    %752 = vmatpush.msra.mxu0 %v641
    %753 = vmatpush.msra.mxu0 %v637
    %754 = vmatpush.msra.mxu0 %v633
    %755 = vmatpush.msra.mxu0 %v629
    %756 = vmatpush.msra.mxu0 %v625
    %757 = vmatpush.msra.mxu0 %v621
    %758 = vmatmul.f32.gmra.mxu0 %v325
    %v759 = vpop.f32.mrf.mxu0
    %v760 = vadd.f32 0.0, %v759
    %761 = vdwg.mxu0
    %v762 = vadd.f32 %v556, %v700
    %v763 = vadd.f32 %v576, %v720
    %v764 = vadd.f32 %v596, %v740
    %v765 = vadd.f32 %v616, %v760
    %v766 = vld [vmem:[#allocation7 + $0x6c0] sm:$0xff]
    %v767 = vld [vmem:[#allocation7 + $0x6c8] sm:$0xff]
    %v768 = vld [vmem:[#allocation7 + $0x6d0] sm:$0xff]
    %v769 = vld [vmem:[#allocation7 + $0x6d8] sm:$0xff]
    %v770 = vld [vmem:[#allocation7 + $0x6e0] sm:$0xff]
    %v771 = vld [vmem:[#allocation7 + $0x6e8] sm:$0xff]
    %v772 = vld [vmem:[#allocation7 + $0x6f0] sm:$0xff]
    %v773 = vld [vmem:[#allocation7 + $0x6f8] sm:$0xff]
    %v774 = vld [vmem:[#allocation7 + $0x700] sm:$0xff]
    %v775 = vld [vmem:[#allocation7 + $0x708] sm:$0xff]
    %v776 = vld [vmem:[#allocation7 + $0x710] sm:$0xff]
    %v777 = vld [vmem:[#allocation7 + $0x718] sm:$0xff]
    %v778 = vld [vmem:[#allocation7 + $0x720] sm:$0xff]
    %v779 = vld [vmem:[#allocation7 + $0x728] sm:$0xff]
    %v780 = vld [vmem:[#allocation7 + $0x730] sm:$0xff]
    %v781 = vld [vmem:[#allocation7 + $0x738] sm:$0xff]
    %v782 = vld [vmem:[#allocation7 + $0x740] sm:$0xff]
    %v783 = vld [vmem:[#allocation7 + $0x748] sm:$0xff]
    %v784 = vld [vmem:[#allocation7 + $0x750] sm:$0xff]
    %v785 = vld [vmem:[#allocation7 + $0x758] sm:$0xff]
    %v786 = vld [vmem:[#allocation7 + $0x760] sm:$0xff]
    %v787 = vld [vmem:[#allocation7 + $0x768] sm:$0xff]
    %v788 = vld [vmem:[#allocation7 + $0x770] sm:$0xff]
    %v789 = vld [vmem:[#allocation7 + $0x778] sm:$0xff]
    %v790 = vld [vmem:[#allocation7 + $0x780] sm:$0xff]
    %v791 = vld [vmem:[#allocation7 + $0x788] sm:$0xff]
    %v792 = vld [vmem:[#allocation7 + $0x790] sm:$0xff]
    %v793 = vld [vmem:[#allocation7 + $0x798] sm:$0xff]
    %v794 = vld [vmem:[#allocation7 + $0x7a0] sm:$0xff]
    %v795 = vld [vmem:[#allocation7 + $0x7a8] sm:$0xff]
    %v796 = vld [vmem:[#allocation7 + $0x7b0] sm:$0xff]
    %v797 = vld [vmem:[#allocation7 + $0x7b8] sm:$0xff]
    %v798 = vld [vmem:[#allocation7 + $0x7c0] sm:$0xff]
    %v799 = vld [vmem:[#allocation7 + $0x7c8] sm:$0xff]
    %v800 = vld [vmem:[#allocation7 + $0x7d0] sm:$0xff]
    %v801 = vld [vmem:[#allocation7 + $0x7d8] sm:$0xff]
    %v802 = vld [vmem:[#allocation7 + $0x7e0] sm:$0xff]
    %v803 = vld [vmem:[#allocation7 + $0x7e8] sm:$0xff]
    %v804 = vld [vmem:[#allocation7 + $0x7f0] sm:$0xff]
    %v805 = vld [vmem:[#allocation7 + $0x7f8] sm:$0xff]
    %v806 = vld [vmem:[#allocation7 + $0x800] sm:$0xff]
    %v807 = vld [vmem:[#allocation7 + $0x808] sm:$0xff]
    %v808 = vld [vmem:[#allocation7 + $0x810] sm:$0xff]
    %v809 = vld [vmem:[#allocation7 + $0x818] sm:$0xff]
    %v810 = vld [vmem:[#allocation7 + $0x820] sm:$0xff]
    %v811 = vld [vmem:[#allocation7 + $0x828] sm:$0xff]
    %v812 = vld [vmem:[#allocation7 + $0x830] sm:$0xff]
    %v813 = vld [vmem:[#allocation7 + $0x838] sm:$0xff]
    %v814 = vld [vmem:[#allocation7 + $0x840] sm:$0xff]
    %v815 = vld [vmem:[#allocation7 + $0x848] sm:$0xff]
    %v816 = vld [vmem:[#allocation7 + $0x850] sm:$0xff]
    %v817 = vld [vmem:[#allocation7 + $0x858] sm:$0xff]
    %v818 = vld [vmem:[#allocation7 + $0x860] sm:$0xff]
    %v819 = vld [vmem:[#allocation7 + $0x868] sm:$0xff]
    %v820 = vld [vmem:[#allocation7 + $0x870] sm:$0xff]
    %v821 = vld [vmem:[#allocation7 + $0x878] sm:$0xff]
    %v822 = vld [vmem:[#allocation7 + $0x880] sm:$0xff]
    %v823 = vld [vmem:[#allocation7 + $0x888] sm:$0xff]
    %v824 = vld [vmem:[#allocation7 + $0x890] sm:$0xff]
    %v825 = vld [vmem:[#allocation7 + $0x898] sm:$0xff]
    %v826 = vld [vmem:[#allocation7 + $0x8a0] sm:$0xff]
    %v827 = vld [vmem:[#allocation7 + $0x8a8] sm:$0xff]
    %v828 = vld [vmem:[#allocation7 + $0x8b0] sm:$0xff]
    %v829 = vld [vmem:[#allocation7 + $0x8b8] sm:$0xff]
    %830 = vmatpush.msra.mxu0 %v826
    %831 = vmatpush.msra.mxu0 %v822
    %832 = vmatpush.msra.mxu0 %v818
    %833 = vmatpush.msra.mxu0 %v814
    %834 = vmatpush.msra.mxu0 %v810
    %835 = vmatpush.msra.mxu0 %v806
    %836 = vmatpush.msra.mxu0 %v802
    %837 = vmatpush.msra.mxu0 %v798
    %838 = vmatpush.msra.mxu0 %v794
    %839 = vmatpush.msra.mxu0 %v790
    %840 = vmatpush.msra.mxu0 %v786
    %841 = vmatpush.msra.mxu0 %v782
    %842 = vmatpush.msra.mxu0 %v778
    %843 = vmatpush.msra.mxu0 %v774
    %844 = vmatpush.msra.mxu0 %v770
    %845 = vmatpush.msra.mxu0 %v766
    %846 = vmatmul.f32.gmra.mxu0 %v328
    %v847 = vpop.f32.mrf.mxu0
    %v848 = vadd.f32 0.0, %v847
    %849 = vdwg.mxu0
    %850 = vmatpush.msra.mxu0 %v827
    %851 = vmatpush.msra.mxu0 %v823
    %852 = vmatpush.msra.mxu0 %v819
    %853 = vmatpush.msra.mxu0 %v815
    %854 = vmatpush.msra.mxu0 %v811
    %855 = vmatpush.msra.mxu0 %v807
    %856 = vmatpush.msra.mxu0 %v803
    %857 = vmatpush.msra.mxu0 %v799
    %858 = vmatpush.msra.mxu0 %v795
    %859 = vmatpush.msra.mxu0 %v791
    %860 = vmatpush.msra.mxu0 %v787
    %861 = vmatpush.msra.mxu0 %v783
    %862 = vmatpush.msra.mxu0 %v779
    %863 = vmatpush.msra.mxu0 %v775
    %864 = vmatpush.msra.mxu0 %v771
    %865 = vmatpush.msra.mxu0 %v767
    %866 = vmatmul.f32.gmra.mxu0 %v328
    %v867 = vpop.f32.mrf.mxu0
    %v868 = vadd.f32 0.0, %v867
    %869 = vdwg.mxu0
    %870 = vmatpush.msra.mxu0 %v828
    %871 = vmatpush.msra.mxu0 %v824
    %872 = vmatpush.msra.mxu0 %v820
    %873 = vmatpush.msra.mxu0 %v816
    %874 = vmatpush.msra.mxu0 %v812
    %875 = vmatpush.msra.mxu0 %v808
    %876 = vmatpush.msra.mxu0 %v804
    %877 = vmatpush.msra.mxu0 %v800
    %878 = vmatpush.msra.mxu0 %v796
    %879 = vmatpush.msra.mxu0 %v792
    %880 = vmatpush.msra.mxu0 %v788
    %881 = vmatpush.msra.mxu0 %v784
    %882 = vmatpush.msra.mxu0 %v780
    %883 = vmatpush.msra.mxu0 %v776
    %884 = vmatpush.msra.mxu0 %v772
    %885 = vmatpush.msra.mxu0 %v768
    %886 = vmatmul.f32.gmra.mxu0 %v328
    %v887 = vpop.f32.mrf.mxu0
    %v888 = vadd.f32 0.0, %v887
    %889 = vdwg.mxu0
    %890 = vmatpush.msra.mxu0 %v829
    %891 = vmatpush.msra.mxu0 %v825
    %892 = vmatpush.msra.mxu0 %v821
    %893 = vmatpush.msra.mxu0 %v817
    %894 = vmatpush.msra.mxu0 %v813
    %895 = vmatpush.msra.mxu0 %v809
    %896 = vmatpush.msra.mxu0 %v805
    %897 = vmatpush.msra.mxu0 %v801
    %898 = vmatpush.msra.mxu0 %v797
    %899 = vmatpush.msra.mxu0 %v793
    %900 = vmatpush.msra.mxu0 %v789
    %901 = vmatpush.msra.mxu0 %v785
    %902 = vmatpush.msra.mxu0 %v781
    %903 = vmatpush.msra.mxu0 %v777
    %904 = vmatpush.msra.mxu0 %v773
    %905 = vmatpush.msra.mxu0 %v769
    %906 = vmatmul.f32.gmra.mxu0 %v328
    %v907 = vpop.f32.mrf.mxu0
    %v908 = vadd.f32 0.0, %v907
    %909 = vdwg.mxu0
    %v910 = vadd.f32 %v762, %v848
    %v911 = vadd.f32 %v763, %v868
    %v912 = vadd.f32 %v764, %v888
    %v913 = vadd.f32 %v765, %v908
    %v914 = vmax.f32 %v910, 0.0
    %v915 = vmax.f32 %v911, 0.0
    %v916 = vmax.f32 %v912, 0.0
    %v917 = vmax.f32 %v913, 0.0
    %918 = vst [vmem:[#allocation8] sm:$0xff] %v914
    %919 = vst [vmem:[#allocation8 + $0x8] sm:$0xff] %v915
    %920 = vst [vmem:[#allocation8 + $0x10] sm:$0xff] %v916
    %921 = vst [vmem:[#allocation8 + $0x18] sm:$0xff] %v917
    // Predicated region
    $region26: #{tpu_custom_call.1} parent=1 // pred_check
      _
    $region27: #{tpu_custom_call.1} parent=1 // pred_check_branch
      %923 = sbr.rel (0) target = $region29
    $region28: #{tpu_custom_call.1} parent=1 // pred_region
      %925 = vsyncadd [#allocation4], 0
      %s927 = sshll.u32 [#allocation8], 4
      %s928 = int_to_ptr.vmem [resolvable:$true] %s927
      %s929 = sshll.u32 %s3, 4
      %s930 = int_to_ptr.hbm [resolvable:$true] %s929
      %932 = dma.vmem_to_hbm [thread:$0]  %s928, 512, %s930, [#allocation4]
    $region29: #{tpu_custom_call.1} parent=1 // pred_fallthru
      _
    // Predicated region
    $region30: #{tpu_custom_call.1} parent=1 // pred_check
      _
    $region31: #{tpu_custom_call.1} parent=1 // pred_check_branch
      %934 = sbr.rel (0) target = $region33
    $region32: #{tpu_custom_call.1} parent=1 // pred_region
      %936 = dma.done [#allocation4], 512
    $region33: #{tpu_custom_call.1} parent=1 // pred_fallthru
      _
    %937 = vsyncpa [#allocation3], 1
    %938 = vsyncpa [#allocation6], 1
    %939 = vsyncpa [#allocation4], 1

</llo_original>
